<compile_context>
chip_gen: v7x
topology: tpu7x:2x2x1
jax: 0.10.0
libtpu: 0.0.40
codegen_flags: <defaults>
</compile_context>

<pallas_src>
import functools

import jax
import jax.numpy as jnp
from jax import lax
from jax.experimental import pallas as pl
from jax.experimental.pallas import tpu as pltpu


def _label_smooth_kernel(x_ref, t_ref, out_ref, *, smoothing, n_rows, tm):
    """Partial (per-block) sum of smoothed-CE losses for a (tm, C) logits tile."""
    x = x_ref[...].astype(jnp.float32)            # (tm, C)
    t = t_ref[...]                                # (tm, 1) int32
    C = x.shape[-1]

    # Numerically stable log-softmax pieces (per row).
    m = jnp.max(x, axis=-1, keepdims=True)        # (tm, 1)
    z = x - m                                     # (tm, C)
    lse = jnp.log(jnp.sum(jnp.exp(z), axis=-1, keepdims=True))   # (tm, 1)

    # Closed form:
    #   loss = -(1 - s - off) * logp[target] - off * sum_c logp[c]
    # with off = s / (C - 1),   logp[target] = z[target] - lse,
    #      sum_c logp[c] = sum_c z[c] - C * lse.
    col = lax.broadcasted_iota(jnp.int32, x.shape, 1)
    z_t = jnp.sum(jnp.where(col == t, z, 0.0), axis=-1, keepdims=True)   # (tm, 1)
    z_sum = jnp.sum(z, axis=-1, keepdims=True)                           # (tm, 1)

    # C == 1 is degenerate in the original module (div by zero in the weight
    # fill, but the scatter overwrites the only column) -> loss is 0; off=0
    # reproduces that exactly.
    off = jnp.float32(smoothing / (C - 1.0)) if C > 1 else jnp.float32(0.0)
    on_minus_off = jnp.float32(1.0 - smoothing) - off
    loss = -on_minus_off * (z_t - lse) - off * (z_sum - jnp.float32(C) * lse)  # (tm,1)

    # Mask rows past the end of the (possibly ragged) batch, reduce to one
    # per-block partial sum, and store it lane-dense (single unmasked vst).
    row = pl.program_id(0) * tm + lax.broadcasted_iota(jnp.int32, (tm, 1), 0)
    loss = jnp.where(row < n_rows, loss, 0.0)
    blk = jnp.sum(loss)
    out_ref[...] = jnp.broadcast_to(blk, out_ref.shape).astype(out_ref.dtype)


def _round_up(a, b):
    return ((a + b - 1) // b) * b


def label_smooth_loss(x, target, smoothing=0.0, *, tm=None, vmem_limit_bytes=None):
    """x: (..., C) floats, target: (...,) ints -> scalar f32 mean smoothed CE."""
    C = x.shape[-1]
    x2 = x.reshape(-1, C)
    t2 = target.reshape(-1).astype(jnp.int32).reshape(-1, 1)
    N = x2.shape[0]

    in_bytes = jnp.dtype(x2.dtype).itemsize

    if vmem_limit_bytes is None:
        try:
            info = pltpu.get_tpu_info()
            cap = int(getattr(info, "vmem_capacity_bytes", 128 * 1024 * 1024))
        except Exception:
            cap = 128 * 1024 * 1024
        # Leave headroom: scoped limit ~70% of physical VMEM
        # (v7x: ~45 MiB of 64 MiB; v5e/v6e: ~90 MiB of 128 MiB).
        vmem_limit_bytes = int(0.70 * cap)

    if tm is None:
        # ~60% of the scoped budget for the double-buffered (tm, C) input tile
        # plus its in-kernel f32 working copy.
        budget = int(0.60 * vmem_limit_bytes)
        tm = budget // max(1, C * (2 * in_bytes + 4))
        tm = min(tm, 2048)            # enough rows to amortize per-step overhead
    tm = min(tm, _round_up(N, 8))
    tm = max(8, (tm // 8) * 8)

    grid = pl.cdiv(N, tm)
    kernel = functools.partial(
        _label_smooth_kernel, smoothing=float(smoothing), n_rows=N, tm=tm)

    partial = pl.pallas_call(
        kernel,
        out_shape=jax.ShapeDtypeStruct((grid, 8, 128), jnp.float32),
        grid=(grid,),
        in_specs=[
            pl.BlockSpec((tm, C), lambda i: (i, 0)),
            pl.BlockSpec((tm, 1), lambda i: (i, 0)),
        ],
        out_specs=pl.BlockSpec((1, 8, 128), lambda i: (i, 0, 0)),
        compiler_params=pltpu.CompilerParams(
            dimension_semantics=("parallel",),
            vmem_limit_bytes=int(vmem_limit_bytes),
        ),
    )(x2, t2)

    # Each block broadcast its partial sum across a full tile; pick one lane per
    # block and finish the mean over exactly N valid rows in f32.
    return jnp.sum(partial[:, 0, 0]) / jnp.float32(N)


def _reference(x, target, smoothing):
    log_prob = jax.nn.log_softmax(x, axis=-1)
    C = x.shape[-1]
    weight = jnp.full(x.shape, smoothing / (C - 1.0), dtype=x.dtype)
    onehot = jax.nn.one_hot(target, C, dtype=x.dtype)
    weight = weight * (1.0 - onehot) + onehot * (1.0 - smoothing)
    return jnp.mean(jnp.sum(-weight * log_prob, axis=-1))


if __name__ == "__main__":
    key = jax.random.PRNGKey(0)
    kx, kt, kx2, kt2 = jax.random.split(key, 4)

    smoothing = 0.1

    # Main small example consistent with the module: a batch of logits (N, C).
    N, C = 16, 32
    x = jax.random.normal(kx, (N, C), dtype=jnp.float32)
    target = jax.random.randint(kt, (N,), 0, C, dtype=jnp.int32)

    loss = jax.block_until_ready(label_smooth_loss(x, target, smoothing=smoothing))
    ref = _reference(x, target, smoothing)
    assert jnp.allclose(loss, ref, atol=1e-5, rtol=1e-5), (loss, ref)

    # Ragged-N / multi-step-grid check (N not a multiple of tm): exercises the
    # in-kernel edge-row masking on the last block.
    N2 = 13
    x_r = jax.random.normal(kx2, (N2, C), dtype=jnp.float32)
    t_r = jax.random.randint(kt2, (N2,), 0, C, dtype=jnp.int32)
    loss_r = jax.block_until_ready(
        label_smooth_loss(x_r, t_r, smoothing=smoothing, tm=8)
    )
    ref_r = _reference(x_r, t_r, smoothing)
    assert jnp.allclose(loss_r, ref_r, atol=1e-5, rtol=1e-5), (loss_r, ref_r)

    print("KERNEL_OK")
</pallas_src>

<mosaic_0001>
module attributes {stable_mosaic.version = 11 : i64} {
  func.func @_label_smooth_kernel(%arg0: i32, %arg1: memref<16x32xf32, #tpu.memory_space<vmem>>, %arg2: memref<16x1xi32, #tpu.memory_space<vmem>>, %arg3: memref<1x8x128xf32, #tpu.memory_space<vmem>>) attributes {dimension_semantics = [#tpu.dimension_semantics<parallel>], iteration_bounds = array<i64: 1>, scalar_prefetch = 0 : i64, scratch_operands = 0 : i64, tpu.core_type = #tpu.core_type<tc>, window_params = [{transform_indices = @transform_0, window_bounds = array<i64: 16, 32>}, {transform_indices = @transform_1, window_bounds = array<i64: 16, 1>}, {transform_indices = @transform_2, window_bounds = array<i64: 1, 8, 128>}]} {
    %c0 = arith.constant 0 : index
    %c0_0 = arith.constant 0 : index
    %0 = vector.load %arg1[%c0, %c0_0] : memref<16x32xf32, #tpu.memory_space<vmem>>, vector<16x32xf32>
    %c0_1 = arith.constant 0 : index
    %c0_2 = arith.constant 0 : index
    %1 = vector.load %arg2[%c0_1, %c0_2] : memref<16x1xi32, #tpu.memory_space<vmem>>, vector<16x1xi32>
    %cst = arith.constant dense<0xFF800000> : vector<16xf32>
    %2 = vector.multi_reduction <maximumf>, %0, %cst [1] : vector<16x32xf32> to vector<16xf32>
    %3 = vector.shape_cast %2 : vector<16xf32> to vector<16x1xf32>
    %4 = vector.broadcast %3 : vector<16x1xf32> to vector<16x32xf32>
    %5 = arith.subf %0, %4 : vector<16x32xf32>
    %6 = math.exp %5 : vector<16x32xf32>
    %cst_3 = arith.constant dense<0.000000e+00> : vector<16xf32>
    %7 = vector.multi_reduction <add>, %6, %cst_3 [1] : vector<16x32xf32> to vector<16xf32>
    %8 = vector.shape_cast %7 : vector<16xf32> to vector<16x1xf32>
    %9 = math.log %8 : vector<16x1xf32>
    %10 = tpu.iota {dimensions = array<i32: 1>} : vector<16x32xi32>
    %11 = vector.broadcast %1 : vector<16x1xi32> to vector<16x32xi32>
    %12 = arith.cmpi eq, %10, %11 : vector<16x32xi32>
    %cst_4 = arith.constant 0.000000e+00 : f32
    %13 = vector.broadcast %cst_4 : f32 to vector<16x32xf32>
    %14 = arith.select %12, %5, %13 : vector<16x32xi1>, vector<16x32xf32>
    %cst_5 = arith.constant dense<0.000000e+00> : vector<16xf32>
    %15 = vector.multi_reduction <add>, %14, %cst_5 [1] : vector<16x32xf32> to vector<16xf32>
    %16 = vector.shape_cast %15 : vector<16xf32> to vector<16x1xf32>
    %cst_6 = arith.constant dense<0.000000e+00> : vector<16xf32>
    %17 = vector.multi_reduction <add>, %5, %cst_6 [1] : vector<16x32xf32> to vector<16xf32>
    %18 = vector.shape_cast %17 : vector<16xf32> to vector<16x1xf32>
    %cst_7 = arith.constant 0.899999976 : f32
    %cst_8 = arith.constant 0.0032258064 : f32
    %19 = arith.subf %cst_7, %cst_8 : f32
    %cst_9 = arith.constant 0.000000e+00 : f32
    %20 = arith.subf %cst_9, %19 : f32
    %21 = arith.subf %16, %9 : vector<16x1xf32>
    %22 = vector.broadcast %20 : f32 to vector<16x1xf32>
    %23 = arith.mulf %22, %21 : vector<16x1xf32>
    %cst_10 = arith.constant 3.200000e+01 : f32
    %24 = vector.broadcast %cst_10 : f32 to vector<16x1xf32>
    %25 = arith.mulf %24, %9 : vector<16x1xf32>
    %26 = arith.subf %18, %25 : vector<16x1xf32>
    %cst_11 = arith.constant 0.0032258064 : f32
    %27 = vector.broadcast %cst_11 : f32 to vector<16x1xf32>
    %28 = arith.mulf %27, %26 : vector<16x1xf32>
    %29 = arith.subf %23, %28 : vector<16x1xf32>
    %c16_i32 = arith.constant 16 : i32
    %30 = arith.muli %arg0, %c16_i32 : i32
    %31 = tpu.iota {dimensions = array<i32: 0>} : vector<16x1xi32>
    %32 = vector.broadcast %30 : i32 to vector<16x1xi32>
    %33 = arith.addi %32, %31 : vector<16x1xi32>
    %c16_i32_12 = arith.constant 16 : i32
    %34 = vector.broadcast %c16_i32_12 : i32 to vector<16x1xi32>
    %35 = arith.cmpi slt, %33, %34 : vector<16x1xi32>
    %cst_13 = arith.constant 0.000000e+00 : f32
    %36 = vector.broadcast %cst_13 : f32 to vector<16x1xf32>
    %37 = arith.select %35, %29, %36 : vector<16x1xi1>, vector<16x1xf32>
    %38 = vector.shape_cast %37 : vector<16x1xf32> to vector<1x16x1xf32>
    %cst_14 = arith.constant dense<0.000000e+00> : vector<1xf32>
    %39 = vector.multi_reduction <add>, %38, %cst_14 [1, 2] : vector<1x16x1xf32> to vector<1xf32>
    %40 = vector.shape_cast %39 : vector<1xf32> to vector<1x1x1xf32>
    %41 = vector.extract %40[0, 0, 0] : f32 from vector<1x1x1xf32>
    %42 = vector.broadcast %41 : f32 to vector<1x8x128xf32>
    %c0_15 = arith.constant 0 : index
    %c0_16 = arith.constant 0 : index
    %c0_17 = arith.constant 0 : index
    %43 = vector.load %arg3[%c0_15, %c0_16, %c0_17] : memref<1x8x128xf32, #tpu.memory_space<vmem>>, vector<1x8x128xf32>
    tpu.vector_store %arg3[%c0_15, %c0_16, %c0_17], %42 {strides = array<i32>} : memref<1x8x128xf32, #tpu.memory_space<vmem>>, vector<1x8x128xf32>,
    return
  }
  func.func @transform_0(%arg0: i32) -> (i32, i32) {
    %c0_i32 = arith.constant 0 : i32
    %c0_i32_0 = arith.constant 0 : i32
    return %arg0, %c0_i32 : i32, i32
  }
  func.func @transform_1(%arg0: i32) -> (i32, i32) {
    %c0_i32 = arith.constant 0 : i32
    %c0_i32_0 = arith.constant 0 : i32
    return %arg0, %c0_i32 : i32, i32
  }
  func.func @transform_2(%arg0: i32) -> (i32, i32, i32) {
    %c0_i32 = arith.constant 0 : i32
    %c0_i32_0 = arith.constant 0 : i32
    %c0_i32_1 = arith.constant 0 : i32
    return %arg0, %c0_i32, %c0_i32_0 : i32, i32, i32
  }
}

</mosaic_0001>

<llo_original>
// kernel: tpu_custom_call.1
$region0: #{tpu_custom_call.1}
  #allocation0 [shape = 'u32[]', space=smem, size = 0x4, offset = 0x4, fixed_abs, tag = 'smem constant byte address 0x4 - core index']
  #allocation1 [shape = 'u32[144,128]{1,0:T(1,128)}', space=vmem, size = 0x12000, scoped, tag = 'internal scratch']
  %s0 = inlined_call_operand.hbm [shape: f32[16,32], index: 0, kind: input, shape index: {}]
  %s1 = inlined_call_operand.hbm [shape: s32[16,1], index: 1, kind: input, shape index: {}]
  %s2 = inlined_call_operand.hbm [shape: f32[1,8,128], index: 2, kind: output, shape index: {}]
  %s3 = sld [smem:[#allocation0]]
  $region26: #{tpu_custom_call.1} parent=0
    _
  %s5 = ssub.s32 1, %s3
  %s6 = scalar_select 0, %s5, %s3
  $region1: #{tpu_custom_call.1} parent=0
    #allocation2 [shape = 'u8[8192]{0}', space=vmem, size = 0x2000, scoped, tag = 'input window, operand 0, single buffered']
    #allocation3 [shape = 's32[1]{0}', space=sflag, size = 0x4, scoped, tag = 'scoped memory for tpu_custom_call.1']
    #allocation4 [shape = 's32[1]{0}', space=sflag, size = 0x4, scoped, tag = 'scoped memory for tpu_custom_call.1']
    #allocation5 [shape = 'u8[8192]{0}', space=vmem, size = 0x2000, scoped, tag = 'input window, operand 1, single buffered']
    #allocation6 [shape = 's32[1]{0}', space=sflag, size = 0x4, scoped, tag = 'scoped memory for tpu_custom_call.1']
    #allocation7 [shape = 'u8[4096]{0}', space=vmem, size = 0x1000, scoped, tag = 'output window, operand 0, single buffered']
    %7 = vsyncpa [#allocation3], 0
    %8 = vsyncpa [#allocation6], 0
    %9 = vsyncpa [#allocation4], 0
    // Predicated region
    $region2: #{tpu_custom_call.1} parent=1 // pred_check
      _
    $region3: #{tpu_custom_call.1} parent=1 // pred_check_branch
      %11 = sbr.rel (0) target = $region5
    $region4: #{tpu_custom_call.1} parent=1 // pred_region
      %s13 = ssub.s32 256, 256
      %14 = vsyncadd [#allocation3], %s13
      %s15 = sshll.u32 [#allocation2], 4
      %s16 = int_to_ptr.vmem [resolvable:$true] %s15
      %21 = dma.hbm_to_vmem [thread:$0]  %s0, 256, %s16, [#allocation3], 128, 128, 8
    $region5: #{tpu_custom_call.1} parent=1 // pred_fallthru
      _
    // Predicated region
    $region6: #{tpu_custom_call.1} parent=1 // pred_check
      _
    $region7: #{tpu_custom_call.1} parent=1 // pred_check_branch
      %23 = sbr.rel (0) target = $region9
    $region8: #{tpu_custom_call.1} parent=1 // pred_region
      %s25 = ssub.s32 256, 256
      %26 = vsyncadd [#allocation6], %s25
      %s27 = sshll.u32 [#allocation5], 4
      %s28 = int_to_ptr.vmem [resolvable:$true] %s27
      %33 = dma.hbm_to_vmem [thread:$0]  %s1, 256, %s28, [#allocation6], 128, 128, 8
    $region9: #{tpu_custom_call.1} parent=1 // pred_fallthru
      _
    // Predicated region
    $region10: #{tpu_custom_call.1} parent=1 // pred_check
      _
    $region11: #{tpu_custom_call.1} parent=1 // pred_check_branch
      %35 = sbr.rel (0) target = $region13
    $region12: #{tpu_custom_call.1} parent=1 // pred_region
      %36 = dma.done [#allocation3], 256
    $region13: #{tpu_custom_call.1} parent=1 // pred_fallthru
      _
    // Predicated region
    $region14: #{tpu_custom_call.1} parent=1 // pred_check
      _
    $region15: #{tpu_custom_call.1} parent=1 // pred_check_branch
      %38 = sbr.rel (0) target = $region17
    $region16: #{tpu_custom_call.1} parent=1 // pred_region
      %39 = dma.done [#allocation6], 256
    $region17: #{tpu_custom_call.1} parent=1 // pred_fallthru
      _
    %v40 = vld [vmem:[#allocation2] sm:$0xff]
    %v41 = vld [vmem:[#allocation2 + $0x8] sm:$0xff]
    %v42 = vld [vmem:[#allocation5] sm:$0xff]
    %v43 = vld [vmem:[#allocation5 + $0x8] sm:$0xff]
    %vm44 = vcmask 261120
    %v45 = vsel %vm44, %v40, -inf
    %46 = vmax.xlane.f32.xlu0 %v45
    %v47 = vpop.xlane.xlu0 %46
    %v48 = vsel %vm44, %v41, -inf
    %49 = vmax.xlane.f32.xlu0 %v48
    %v50 = vpop.xlane.xlu0 %49
    %v51 = vsub.f32 %v40, %v47
    %v52 = vsub.f32 %v41, %v50
    %v53 = vmul.f32 %v51, 1.442695
    %v54 = vpow.pop %v53
    %v55 = vmul.f32 %v52, 1.442695
    %v56 = vpow.pop %v55
    %v57 = vsel %vm44, %v54, 0.0
    %58 = vadd.xlane.f32.xlu0 %v57
    %v59 = vpop.xlane.xlu0 %58
    %v60 = vsel %vm44, %v56, 0.0
    %61 = vadd.xlane.f32.xlu0 %v60
    %v62 = vpop.xlane.xlu0 %61
    %v63 = vlog2.pop %v59
    %v64 = vmul.f32 %v63, 0.6931472
    %v65 = vlog2.pop %v62
    %v66 = vmul.f32 %v65, 0.6931472
    %v67 = vlaneseq
    %v68 = vand.u32 %v67, 127
    %69 = vset.pattern.permute.xlu0 0
    %70 = vperm.xlu0 %69, %v42
    %v71 = vpop.permute.xlu0 %70
    %72 = vset.pattern.permute.xlu0 0
    %73 = vperm.xlu0 %72, %v43
    %v74 = vpop.permute.xlu0 %73
    %vm75 = vcmp.eq.s32.totalorder %v68, %v71
    %vm76 = vcmp.eq.s32.totalorder %v68, %v74
    %v77 = vsel %vm75, %v51, 0.0
    %v78 = vsel %vm76, %v52, 0.0
    %v79 = vsel %vm44, %v77, 0.0
    %80 = vadd.xlane.f32.xlu0 %v79
    %v81 = vpop.xlane.xlu0 %80
    %v82 = vsel %vm44, %v78, 0.0
    %83 = vadd.xlane.f32.xlu0 %v82
    %v84 = vpop.xlane.xlu0 %83
    %v85 = vsel %vm44, %v51, 0.0
    %86 = vadd.xlane.f32.xlu0 %v85
    %v87 = vpop.xlane.xlu0 %86
    %v88 = vsel %vm44, %v52, 0.0
    %89 = vadd.xlane.f32.xlu0 %v88
    %v90 = vpop.xlane.xlu0 %89
    %v91 = vsub.f32 %v81, %v64
    %v92 = vsub.f32 %v84, %v66
    %v93 = vmul.f32 %v91, -0.8967742
    %v94 = vmul.f32 %v92, -0.8967742
    %v95 = vmul.f32 %v64, 32.0
    %v96 = vmul.f32 %v66, 32.0
    %v97 = vsub.f32 %v87, %v95
    %v98 = vsub.f32 %v90, %v96
    %v99 = vmul.f32 %v97, 0.0032258064
    %v100 = vmul.f32 %v98, 0.0032258064
    %v101 = vsub.f32 %v93, %v99
    %v102 = vsub.f32 %v94, %v100
    %s103 = smul.u32 0, 16
    %v104 = vlaneseq
    %v105 = vshrl.u32 %v104, 7
    %v106 = vadd.s32 %v105, 8
    %v107 = vstv %s103
    %v108 = vadd.s32 %v107, %v105
    %v109 = vadd.s32 %v107, %v106
    %vm110 = vcmp.lt.s32.totalorder %v108, 16
    %vm111 = vcmp.lt.s32.totalorder %v109, 16
    %v112 = vsel %vm110, %v101, 0.0
    %v113 = vsel %vm111, %v102, 0.0
    %vm114 = vcmask 7168
    %v115 = vsel %vm114, %v112, 0.0
    %v116 = vsel %vm114, %v113, 0.0
    %v117 = vadd.f32 %v115, %v116
    %118 = vadd.xlane.f32.xlu0 %v117
    %v119 = vpop.xlane.xlu0 %118
    %v120 = vrot.slane %v119, 4
    %v121 = vadd.f32 %v119, %v120
    %v122 = vrot.slane %v121, 2
    %v123 = vadd.f32 %v121, %v122
    %v124 = vrot.slane %v123, 1
    %v125 = vadd.f32 %v123, %v124
    %s126 = vtos %v125
    %v127 = vstv %s126
    %128 = vst [vmem:[#allocation7] sm:$0xff] %v127
    // Predicated region
    $region18: #{tpu_custom_call.1} parent=1 // pred_check
      _
    $region19: #{tpu_custom_call.1} parent=1 // pred_check_branch
      %130 = sbr.rel (0) target = $region21
    $region20: #{tpu_custom_call.1} parent=1 // pred_region
      %s132 = ssub.s32 128, 128
      %133 = vsyncadd [#allocation4], %s132
      %s135 = sshll.u32 [#allocation7], 4
      %s136 = int_to_ptr.vmem [resolvable:$true] %s135
      %138 = dma.vmem_to_hbm [thread:$0]  %s136, 128, %s2, [#allocation4]
    $region21: #{tpu_custom_call.1} parent=1 // pred_fallthru
      _
    // Predicated region
    $region22: #{tpu_custom_call.1} parent=1 // pred_check
      _
    $region23: #{tpu_custom_call.1} parent=1 // pred_check_branch
      %140 = sbr.rel (0) target = $region25
    $region24: #{tpu_custom_call.1} parent=1 // pred_region
      %141 = dma.done [#allocation4], 128
    $region25: #{tpu_custom_call.1} parent=1 // pred_fallthru
      _
    %142 = vsyncpa [#allocation3], 1
    %143 = vsyncpa [#allocation6], 1
    %144 = vsyncpa [#allocation4], 1

</llo_original>
